<compile_context>
chip_gen: v7x
topology: tpu7x:2x2x1
jax: 0.10.0
libtpu: 0.0.40
codegen_flags: <defaults>
</compile_context>

<pallas_src>
import functools

import jax
import jax.numpy as jnp
from jax.experimental import pallas as pl
from jax.experimental.pallas import tpu as pltpu


# ----------------------------- Pallas kernels -----------------------------

def _mlp_l2norm_kernel(x_ref, w1_ref, b1_ref, w2_ref, b2_ref, o_ref):
    # x_ref: (TM, Cin_pad)   w1: (Cin_pad, NCp) bf16   b1: (1, NCp) f32
    # w2: (NCp, NCp) bf16    b2: (1, NCp) f32
    # MXU operands are bf16; accumulation and the L2-norm epilogue stay f32.
    x = x_ref[...].astype(jnp.bfloat16)
    h = jnp.dot(x, w1_ref[...], preferred_element_type=jnp.float32) + b1_ref[...]
    h = jnp.maximum(h, 0.0)                                   # ReLU
    y = (jnp.dot(h.astype(jnp.bfloat16), w2_ref[...],
                 preferred_element_type=jnp.float32) + b2_ref[...])
    # Normalize(power=2): norm = sqrt(sum(y^2, dim=-1)); out = y / (norm + 1e-7)
    norm = jnp.sqrt(jnp.sum(y * y, axis=-1, keepdims=True))
    inv = pl.reciprocal(norm + 1e-7, approx=True)             # EUP slot, frees VALU
    o_ref[...] = (y * inv).astype(o_ref.dtype)


def _l2norm_kernel(x_ref, o_ref):
    x = x_ref[...].astype(jnp.float32)
    norm = jnp.sqrt(jnp.sum(x * x, axis=-1, keepdims=True))
    inv = pl.reciprocal(norm + 1e-7, approx=True)
    o_ref[...] = (x * inv).astype(o_ref.dtype)


# ----------------------------- wrappers -----------------------------------

def _round_up(n, m):
    return ((n + m - 1) // m) * m


# Budget inside which the row tile is sized; the requested vmem_limit_bytes
# (<= 32 MiB) is within every generation's grantable scoped VMEM.
_VMEM_BUDGET = 24 * 1024 * 1024


def _choose_tm(n_rows, per_row_bytes, fixed_bytes=0):
    """Row tile: as large as possible (fills MXU rows, amortizes the ~600-cycle
    per-grid-step overhead) but (a) capped at 512, (b) capped so the real VMEM
    footprint (tiles + weights + intermediates) stays inside _VMEM_BUDGET, and
    (c) capped at ~half the rows so there are >=2 grid steps whenever there are
    >=16 rows -- dimension_semantics=("parallel",) then shards across v7x's two
    TensorCores (no effect on v5e/v6e, which have a single TC)."""
    n8 = _round_up(max(n_rows, 1), 8)
    half = _round_up((n8 + 1) // 2, 8)
    avail = max(_VMEM_BUDGET - fixed_bytes, per_row_bytes * 8)
    cap = max(8, (avail // max(per_row_bytes, 1)) // 8 * 8)
    return int(max(8, min(512, half, cap)))


def _vmem_limit(est_bytes):
    # Enough scoped VMEM for the estimated footprint plus margin; 32 MiB ceiling
    # is safe on v5e/v6e/v7x.
    return int(min(max(int(est_bytes * 1.5) + (2 << 20), 16 << 20), 32 << 20))


def _mlp_footprint(cin_pad, nc_pad, itemsize):
    # Per-row: double-buffered x and out tiles + in-kernel bf16 x copy and the
    # two f32 intermediates (h, y).
    per_row = (2 * cin_pad + 2 * nc_pad) * itemsize + cin_pad * 2 + 2 * nc_pad * 4
    # Weights/biases: Buffered(1) means one buffer, but budget two (safe even if
    # the hint is ignored).  Weights are bf16, biases f32.
    fixed = 2 * ((cin_pad * nc_pad + nc_pad * nc_pad) * 2 + 2 * nc_pad * 4)
    return per_row, fixed


def _l2norm_footprint(c_pad, itemsize):
    # Double-buffered in/out tiles + f32 working copy.
    return 4 * c_pad * itemsize + c_pad * 4, 0


def _pad_rows(x, tm):
    n = x.shape[0]
    n_pad = _round_up(n, tm)
    if n_pad != n:
        x = jnp.pad(x, ((0, n_pad - n), (0, 0)))
    return x, n


@functools.partial(jax.jit, static_argnames=("tm",))
def _mlp_l2norm_impl(x, w1, b1, w2, b2, *, tm):
    n, cin = x.shape
    nc = w1.shape[1]
    # Pad Cin and the MLP width to lane-dense multiples of 128 with zeros:
    # zero x columns / w1 rows leave x@w1 unchanged, zero weight/bias columns
    # give zero output columns, so the L2 norm is unchanged; the padded
    # columns are sliced off below.  (Default nc=256 is already 256-aligned,
    # so the second matmul's K stays a single MXU pass on v6e/v7x.)
    cin_pad = _round_up(cin, 128)
    nc_pad = _round_up(nc, 128)
    if cin_pad != cin:
        x = jnp.pad(x, ((0, 0), (0, cin_pad - cin)))
        w1 = jnp.pad(w1, ((0, cin_pad - cin), (0, 0)))
    if nc_pad != nc:
        w1 = jnp.pad(w1, ((0, 0), (0, nc_pad - nc)))
        b1 = jnp.pad(b1, ((0, 0), (0, nc_pad - nc)))
        w2 = jnp.pad(w2, ((0, nc_pad - nc), (0, nc_pad - nc)))
        b2 = jnp.pad(b2, ((0, 0), (0, nc_pad - nc)))
    # MXU wants bf16 operands on v6e/v7x; f32 accumulation is kept in-kernel.
    w1 = w1.astype(jnp.bfloat16)
    w2 = w2.astype(jnp.bfloat16)
    b1 = b1.astype(jnp.float32)
    b2 = b2.astype(jnp.float32)

    xp, _ = _pad_rows(x, tm)
    n_pad = xp.shape[0]
    per_row, fixed = _mlp_footprint(cin_pad, nc_pad, x.dtype.itemsize)
    vlim = _vmem_limit(fixed + per_row * tm)

    out = pl.pallas_call(
        _mlp_l2norm_kernel,
        out_shape=jax.ShapeDtypeStruct((n_pad, nc_pad), x.dtype),
        grid_spec=pltpu.PrefetchScalarGridSpec(
            num_scalar_prefetch=0,
            grid=(n_pad // tm,),
            in_specs=[
                pl.BlockSpec((tm, cin_pad), lambda i: (i, 0)),
                # Constant-index weight/bias blocks stay resident; Buffered(1)
                # drops their second (useless) pipeline buffer.
                pl.BlockSpec((cin_pad, nc_pad), lambda i: (0, 0),
                             pipeline_mode=pl.Buffered(1)),
                pl.BlockSpec((1, nc_pad), lambda i: (0, 0),
                             pipeline_mode=pl.Buffered(1)),
                pl.BlockSpec((nc_pad, nc_pad), lambda i: (0, 0),
                             pipeline_mode=pl.Buffered(1)),
                pl.BlockSpec((1, nc_pad), lambda i: (0, 0),
                             pipeline_mode=pl.Buffered(1)),
            ],
            out_specs=pl.BlockSpec((tm, nc_pad), lambda i: (i, 0)),
        ),
        compiler_params=pltpu.CompilerParams(
            dimension_semantics=("parallel",),
            vmem_limit_bytes=vlim),
    )(xp, w1, b1, w2, b2)
    return out[:n, :nc]


def mlp_l2norm(x, w1, b1, w2, b2):
    """x: (N, Cin) -> relu(x@w1+b1)@w2+b2, L2-normalized along last dim."""
    n, cin = x.shape
    cin_pad = _round_up(cin, 128)
    nc_pad = _round_up(w1.shape[1], 128)
    per_row, fixed = _mlp_footprint(cin_pad, nc_pad, x.dtype.itemsize)
    tm = _choose_tm(n, per_row, fixed)
    return _mlp_l2norm_impl(x, w1, b1, w2, b2, tm=tm)


@functools.partial(jax.jit, static_argnames=("tm",))
def _l2norm_rows_impl(x, *, tm):
    n, c = x.shape
    # Zero-pad the feature dim to a multiple of 128 (zeros don't change the L2
    # norm) so loads/stores are lane-dense, then slice off.
    c_pad = _round_up(c, 128)
    if c_pad != c:
        x = jnp.pad(x, ((0, 0), (0, c_pad - c)))
    xp, _ = _pad_rows(x, tm)
    n_pad = xp.shape[0]
    per_row, fixed = _l2norm_footprint(c_pad, x.dtype.itemsize)
    vlim = _vmem_limit(fixed + per_row * tm)

    out = pl.pallas_call(
        _l2norm_kernel,
        out_shape=jax.ShapeDtypeStruct((n_pad, c_pad), x.dtype),
        grid_spec=pltpu.PrefetchScalarGridSpec(
            num_scalar_prefetch=0,
            grid=(n_pad // tm,),
            in_specs=[pl.BlockSpec((tm, c_pad), lambda i: (i, 0))],
            out_specs=pl.BlockSpec((tm, c_pad), lambda i: (i, 0)),
        ),
        compiler_params=pltpu.CompilerParams(
            dimension_semantics=("parallel",),
            vmem_limit_bytes=vlim),
    )(xp)
    return out[:n, :c]


def l2norm_rows(x):
    """x: (N, C) -> x / (||x||_2 along last dim + 1e-7)."""
    n, c = x.shape
    c_pad = _round_up(c, 128)
    per_row, fixed = _l2norm_footprint(c_pad, x.dtype.itemsize)
    tm = _choose_tm(n, per_row, fixed)
    return _l2norm_rows_impl(x, tm=tm)


# ----------------------------- module port ---------------------------------

class PatchSampleF:
    def __init__(self, use_mlp=False, init_gain=0.02, nc=256, key=None):
        self.use_mlp = use_mlp
        self.nc = nc
        self.init_gain = init_gain
        self.mlp_init = False
        self._key = key if key is not None else jax.random.PRNGKey(123)
        self.mlps = []

    def create_mlp(self, feats):
        # nn.Linear(input_nc, nc) -> ReLU -> nn.Linear(nc, nc)
        # init_weights(init_type='normal'): weight ~ N(0, init_gain), bias = 0
        key = self._key
        for feat in feats:
            input_nc = feat.shape[1]
            key, kw1, kw2 = jax.random.split(key, 3)
            w1 = self.init_gain * jax.random.normal(kw1, (input_nc, self.nc), jnp.float32)
            b1 = jnp.zeros((1, self.nc), jnp.float32)
            w2 = self.init_gain * jax.random.normal(kw2, (self.nc, self.nc), jnp.float32)
            b2 = jnp.zeros((1, self.nc), jnp.float32)
            self.mlps.append((w1, b1, w2, b2))
        self.mlp_init = True

    def __call__(self, feats, num_patches=64, patch_ids=None, patch_key=None):
        return_ids = []
        return_feats = []
        if self.use_mlp and not self.mlp_init:
            self.create_mlp(feats)
        if patch_key is None:
            patch_key = jax.random.PRNGKey(0)

        for feat_id, feat in enumerate(feats):
            B, C, H, W = feat.shape

            if num_patches > 0:
                if patch_ids is not None:
                    patch_id = patch_ids[feat_id]
                else:
                    patch_key, sub = jax.random.split(patch_key)
                    perm = jax.random.permutation(sub, H * W)
                    patch_id = perm[: min(num_patches, H * W)]
                # Gather BEFORE the layout change: sample P columns of the NCHW
                # view (O(B*C*P) bytes) instead of materializing a full NHWC
                # copy and indexing rows afterwards.
                feat_flat = feat.reshape(B, C, H * W)                 # NCHW view
                x_gather = jnp.take(feat_flat, patch_id, axis=2)      # (B, C, P)
                x_sample = jnp.transpose(x_gather, (0, 2, 1)).reshape(-1, C)  # (B*P, C)

                if self.use_mlp:
                    w1, b1, w2, b2 = self.mlps[feat_id]
                    x_sample = mlp_l2norm(x_sample, w1, b1, w2, b2)
                else:
                    x_sample = l2norm_rows(x_sample)
            else:
                patch_id = jnp.zeros((0,), jnp.int32)
                if self.use_mlp:
                    # TODO(synk): MLP + num_patches==0 path (MLP over every
                    # spatial location, normalize over the spatial dim, reshape
                    # to NCHW) not wired to the fused kernel.
                    raise NotImplementedError("use_mlp with num_patches==0 not supported")
                # Reference normalizes over dim 1 == H*W in this branch, then
                # permutes back to (B, C, H, W).  On NCHW data that is simply a
                # per-(b, c) row normalize over H*W -- no transpose needed.
                xt = l2norm_rows(feat.reshape(B * C, H * W))
                x_sample = xt.reshape(B, C, H, W)

            return_ids.append(patch_id)
            return_feats.append(x_sample)
        return return_feats, return_ids


# ----------------------------- reference (pure JAX) ------------------------

def _ref_forward(model, feats, num_patches, patch_ids):
    outs = []
    for i, feat in enumerate(feats):
        B, C, H, W = feat.shape
        fr = jnp.transpose(feat, (0, 2, 3, 1)).reshape(B, H * W, C)
        xs = fr[:, patch_ids[i], :].reshape(-1, C)
        if model.use_mlp:
            w1, b1, w2, b2 = model.mlps[i]
            xs = jnp.maximum(xs @ w1 + b1.reshape(-1), 0.0)
            xs = xs @ w2 + b2.reshape(-1)
        norm = jnp.sqrt(jnp.sum(xs * xs, axis=1, keepdims=True))
        outs.append(xs / (norm + 1e-7))
    return outs


# ----------------------------- main -----------------------------------------

if __name__ == "__main__":
    key = jax.random.PRNGKey(0)
    kf0, kf1, kperm = jax.random.split(key, 3)

    B, C, H, W = 2, 4, 16, 16
    num_patches = 8
    feats = [
        jax.random.normal(kf0, (B, C, H, W), jnp.float32),
        jax.random.normal(kf1, (B, 2 * C, H // 2, W // 2), jnp.float32),
    ]

    # --- use_mlp=True path (fused MLP + L2-norm Pallas kernel, bf16 MXU) ---
    model = PatchSampleF(use_mlp=True, nc=32, init_gain=0.02,
                         key=jax.random.PRNGKey(7))
    out_feats, out_ids = model(feats, num_patches=num_patches, patch_key=kperm)
    out_feats = [jax.block_until_ready(f) for f in out_feats]

    ref = _ref_forward(model, feats, num_patches, out_ids)
    for got, exp in zip(out_feats, ref):
        assert got.shape == exp.shape, (got.shape, exp.shape)
        # bf16 MXU operands + approx reciprocal -> relaxed tolerance.
        assert jnp.allclose(got, exp, atol=2e-2, rtol=2e-2)

    # --- use_mlp=False path (standalone L2-norm Pallas kernel) ---
    model2 = PatchSampleF(use_mlp=False)
    out_feats2, out_ids2 = model2(feats, num_patches=num_patches, patch_key=kperm)
    out_feats2 = [jax.block_until_ready(f) for f in out_feats2]
    ref2 = _ref_forward(model2, feats, num_patches, out_ids2)
    for got, exp in zip(out_feats2, ref2):
        assert got.shape == exp.shape
        assert jnp.allclose(got, exp, atol=1e-2, rtol=1e-2)

    # --- use_mlp=False, num_patches==0 path (spatial-dim normalize, NCHW out) ---
    out_feats3, _ = model2([feats[0]], num_patches=0)
    out_feats3 = [jax.block_until_ready(f) for f in out_feats3]
    fr = jnp.transpose(feats[0], (0, 2, 3, 1)).reshape(B, H * W, C)
    nrm = jnp.sqrt(jnp.sum(fr * fr, axis=1, keepdims=True))
    ref3 = jnp.transpose(fr / (nrm + 1e-7), (0, 2, 1)).reshape(B, C, H, W)
    assert out_feats3[0].shape == ref3.shape
    assert jnp.allclose(out_feats3[0], ref3, atol=1e-2, rtol=1e-2)

    print("KERNEL_OK")
</pallas_src>

<mosaic_0001>
module attributes {stable_mosaic.version = 11 : i64} {
  func.func @_mlp_l2norm_kernel(%arg0: i32, %arg1: memref<8x128xf32, #tpu.memory_space<vmem>>, %arg2: memref<128x128xbf16, #tpu.memory_space<vmem>>, %arg3: memref<1x128xf32, #tpu.memory_space<vmem>>, %arg4: memref<128x128xbf16, #tpu.memory_space<vmem>>, %arg5: memref<1x128xf32, #tpu.memory_space<vmem>>, %arg6: memref<8x128xf32, #tpu.memory_space<vmem>>) attributes {dimension_semantics = [#tpu.dimension_semantics<parallel>], iteration_bounds = array<i64: 2>, scalar_prefetch = 0 : i64, scratch_operands = 0 : i64, tpu.core_type = #tpu.core_type<tc>, window_params = [{transform_indices = @transform_0, window_bounds = array<i64: 8, 128>}, {pipeline_mode = #tpu.pipeline_mode<synchronous>, transform_indices = @transform_1, window_bounds = array<i64: 128, 128>}, {pipeline_mode = #tpu.pipeline_mode<synchronous>, transform_indices = @transform_2, window_bounds = array<i64: 1, 128>}, {pipeline_mode = #tpu.pipeline_mode<synchronous>, transform_indices = @transform_3, window_bounds = array<i64: 128, 128>}, {pipeline_mode = #tpu.pipeline_mode<synchronous>, transform_indices = @transform_4, window_bounds = array<i64: 1, 128>}, {transform_indices = @transform_5, window_bounds = array<i64: 8, 128>}]} {
    %c0 = arith.constant 0 : index
    %c0_0 = arith.constant 0 : index
    %0 = vector.load %arg1[%c0, %c0_0] : memref<8x128xf32, #tpu.memory_space<vmem>>, vector<8x128xf32>
    %1 = arith.truncf %0 : vector<8x128xf32> to vector<8x128xbf16>
    %c0_1 = arith.constant 0 : index
    %c0_2 = arith.constant 0 : index
    %2 = vector.load %arg2[%c0_1, %c0_2] : memref<128x128xbf16, #tpu.memory_space<vmem>>, vector<128x128xbf16>
    %cst = arith.constant dense<0.000000e+00> : vector<8x128xf32>
    %3 = tpu.matmul %1, %2, %cst {dimension_numbers = #tpu.dot_dimension_numbers<[1], [0], [0], [1], [0, 0, 1, 1], [], []>} : vector<8x128xbf16>, vector<128x128xbf16>, vector<8x128xf32> -> vector<8x128xf32>
    %c0_3 = arith.constant 0 : index
    %c0_4 = arith.constant 0 : index
    %4 = vector.load %arg3[%c0_3, %c0_4] : memref<1x128xf32, #tpu.memory_space<vmem>>, vector<1x128xf32>
    %5 = vector.broadcast %4 : vector<1x128xf32> to vector<8x128xf32>
    %6 = arith.addf %3, %5 : vector<8x128xf32>
    %cst_5 = arith.constant 0.000000e+00 : f32
    %7 = vector.broadcast %cst_5 : f32 to vector<8x128xf32>
    %8 = arith.maximumf %6, %7 : vector<8x128xf32>
    %9 = arith.truncf %8 : vector<8x128xf32> to vector<8x128xbf16>
    %c0_6 = arith.constant 0 : index
    %c0_7 = arith.constant 0 : index
    %10 = vector.load %arg4[%c0_6, %c0_7] : memref<128x128xbf16, #tpu.memory_space<vmem>>, vector<128x128xbf16>
    %cst_8 = arith.constant dense<0.000000e+00> : vector<8x128xf32>
    %11 = tpu.matmul %9, %10, %cst_8 {dimension_numbers = #tpu.dot_dimension_numbers<[1], [0], [0], [1], [0, 0, 1, 1], [], []>} : vector<8x128xbf16>, vector<128x128xbf16>, vector<8x128xf32> -> vector<8x128xf32>
    %c0_9 = arith.constant 0 : index
    %c0_10 = arith.constant 0 : index
    %12 = vector.load %arg5[%c0_9, %c0_10] : memref<1x128xf32, #tpu.memory_space<vmem>>, vector<1x128xf32>
    %13 = vector.broadcast %12 : vector<1x128xf32> to vector<8x128xf32>
    %14 = arith.addf %11, %13 : vector<8x128xf32>
    %15 = arith.mulf %14, %14 : vector<8x128xf32>
    %cst_11 = arith.constant dense<0.000000e+00> : vector<8xf32>
    %16 = vector.multi_reduction <add>, %15, %cst_11 [1] : vector<8x128xf32> to vector<8xf32>
    %17 = vector.shape_cast %16 : vector<8xf32> to vector<8x1xf32>
    %18 = math.sqrt %17 : vector<8x1xf32>
    %cst_12 = arith.constant 1.000000e-07 : f32
    %19 = vector.broadcast %cst_12 : f32 to vector<8x1xf32>
    %20 = arith.addf %18, %19 : vector<8x1xf32>
    %21 = tpu.reciprocal %20 {approx = true} : vector<8x1xf32> -> vector<8x1xf32>
    %22 = vector.broadcast %21 : vector<8x1xf32> to vector<8x128xf32>
    %23 = arith.mulf %14, %22 : vector<8x128xf32>
    %c0_13 = arith.constant 0 : index
    %c0_14 = arith.constant 0 : index
    %24 = vector.load %arg6[%c0_13, %c0_14] : memref<8x128xf32, #tpu.memory_space<vmem>>, vector<8x128xf32>
    tpu.vector_store %arg6[%c0_13, %c0_14], %23 {strides = array<i32>} : memref<8x128xf32, #tpu.memory_space<vmem>>, vector<8x128xf32>,
    return
  }
  func.func @transform_0(%arg0: i32) -> (i32, i32) {
    %c0_i32 = arith.constant 0 : i32
    %c0_i32_0 = arith.constant 0 : i32
    return %arg0, %c0_i32 : i32, i32
  }
  func.func @transform_1(%arg0: i32) -> (i32, i32) {
    %c0_i32 = arith.constant 0 : i32
    %c0_i32_0 = arith.constant 0 : i32
    %c0_i32_1 = arith.constant 0 : i32
    return %c0_i32, %c0_i32_0 : i32, i32
  }
  func.func @transform_2(%arg0: i32) -> (i32, i32) {
    %c0_i32 = arith.constant 0 : i32
    %c0_i32_0 = arith.constant 0 : i32
    %c0_i32_1 = arith.constant 0 : i32
    return %c0_i32, %c0_i32_0 : i32, i32
  }
  func.func @transform_3(%arg0: i32) -> (i32, i32) {
    %c0_i32 = arith.constant 0 : i32
    %c0_i32_0 = arith.constant 0 : i32
    %c0_i32_1 = arith.constant 0 : i32
    return %c0_i32, %c0_i32_0 : i32, i32
  }
  func.func @transform_4(%arg0: i32) -> (i32, i32) {
    %c0_i32 = arith.constant 0 : i32
    %c0_i32_0 = arith.constant 0 : i32
    %c0_i32_1 = arith.constant 0 : i32
    return %c0_i32, %c0_i32_0 : i32, i32
  }
  func.func @transform_5(%arg0: i32) -> (i32, i32) {
    %c0_i32 = arith.constant 0 : i32
    %c0_i32_0 = arith.constant 0 : i32
    return %arg0, %c0_i32 : i32, i32
  }
}

</mosaic_0001>

<llo_original>
// kernel: _mlp_l2norm_impl.1
$region0: #{_mlp_l2norm_impl.1}
  #allocation0 [shape = 'u32[]', space=smem, size = 0x4, offset = 0x4, fixed_abs, tag = 'smem constant byte address 0x4 - core index']
  #allocation1 [shape = 'u32[144,128]{1,0:T(1,128)}', space=vmem, size = 0x12000, scoped, tag = 'internal scratch']
  %s0 = inlined_call_operand.vmem [shape: f32[16,128], index: 0, kind: input, shape index: {}]
  %s1 = inlined_call_operand.vmem [shape: bf16[128,128], index: 1, kind: input, shape index: {}]
  %s2 = inlined_call_operand.vmem [shape: f32[1,128], index: 2, kind: input, shape index: {}]
  %s3 = inlined_call_operand.vmem [shape: bf16[128,128], index: 3, kind: input, shape index: {}]
  %s4 = inlined_call_operand.vmem [shape: f32[1,128], index: 4, kind: input, shape index: {}]
  %s5 = inlined_call_operand.hbm [shape: f32[16,128], index: 5, kind: output, shape index: {}]
  %s6 = sld [smem:[#allocation0]]
  $region53: #{_mlp_l2norm_impl.1} parent=0
    _
  %s8 = ssub.s32 1, %s6
  %s9 = scalar_select 0, %s8, %s6
  $region1: #{_mlp_l2norm_impl.1} parent=0
    #allocation2 [shape = 'u8[8192]{0}', space=vmem, size = 0x2000, scoped, tag = 'output window, operand 0']
    #allocation3 [shape = 's32[2]{0}', space=sflag, size = 0x8, scoped, tag = 'scoped memory for _mlp_l2norm_impl.1']
    %10 = vsyncpa [#allocation3], 0
    %s11 = scalar_lea.sflag [#allocation3], 1
    %12 = vsyncpa %s11, 0
    loop: start=0, step=1, limit=4
    $region2: #{_mlp_l2norm_impl.1} parent=1 // loop_pre_header
      _
    $region3: #{_mlp_l2norm_impl.1} parent=1 // loop_header
      %s14 = sphi 0, %s18
      %p15 = scmp.ge.s32.totalorder %s14, 4
      %s24 = sphi 0, %s26
      %s27 = sphi 0, %s24
      %s28 = sphi 0, %s27
      %s44 = sphi 0, %s28
      %s48 = sphi 0, %s48
      %s50 = sphi 0, %s48
      %s51 = sphi 0, %s50
      %s65 = sphi 0, %s51
      %s69 = sphi 0, %s69
      %s71 = sphi 0, %s69
      %s72 = sphi 0, %s71
      %s86 = sphi 0, %s72
      %s90 = sphi 0, %s90
      %s92 = sphi 0, %s90
      %s93 = sphi 0, %s92
      %s107 = sphi 0, %s93
      %s111 = sphi 0, %s111
      %s113 = sphi 0, %s111
      %s114 = sphi 0, %s113
      %s128 = sphi 0, %s114
      %s134 = sphi 0, %s136
      %s137 = sphi 0, %s134
      %s138 = sphi 0, %s137
      %s154 = sphi 0, %s138
    $region4: #{_mlp_l2norm_impl.1} parent=1 // loop_header_branch
      %17 = sbr.rel (%p15) target = $region8
    $region5: #{_mlp_l2norm_impl.1} parent=1 // loop_body
      %s19 = ssub.s32 %s14, 1
      %s20 = ssub.s32 %s14, 2
      %s21 = sadd.s32 %s14, 1
      %s22 = ssub.s32 %s14, %s21
      %p23 = scmp.eq.s32.totalorder %s22, 0
      %s25 = sadd.s32 %s24, 1
      %s26 = scalar_select %p23, %s24, %s25
      %p29 = pneg %p23
      %p30 = scmp.eq.s32.totalorder %s14, 1
      %p31 = por %p29, %p30
      %p32 = scmp.ne.s32.totalorder %s24, %s27
      %p33 = scmp.eq.s32.totalorder %s14, 0
      %p34 = por %p32, %p33
      %p35 = scmp.ne.s32.totalorder %s24, %s27
      %p36 = scmp.eq.s32.totalorder %s19, 1
      %p37 = por %p35, %p36
      %p38 = scmp.ne.s32.totalorder %s27, %s28
      %p39 = scmp.eq.s32.totalorder %s19, 0
      %p40 = por %p38, %p39
      %p41 = scmp.ne.s32.totalorder %s27, %s28
      %p42 = scmp.eq.s32.totalorder %s20, 1
      %p43 = por %p41, %p42
      %p45 = scmp.ne.s32.totalorder %s28, %s44
      %p46 = scmp.eq.s32.totalorder %s20, 0
      %p47 = por %p45, %p46
      %s49 = sadd.s32 %s48, 1
      %p52 = scmp.eq.s32.totalorder %s14, 1
      %p53 = scmp.ne.s32.totalorder %s48, %s50
      %p54 = scmp.eq.s32.totalorder %s14, 0
      %p55 = por %p53, %p54
      %p56 = scmp.ne.s32.totalorder %s48, %s50
      %p57 = scmp.eq.s32.totalorder %s19, 1
      %p58 = por %p56, %p57
      %p59 = scmp.ne.s32.totalorder %s50, %s51
      %p60 = scmp.eq.s32.totalorder %s19, 0
      %p61 = por %p59, %p60
      %p62 = scmp.ne.s32.totalorder %s50, %s51
      %p63 = scmp.eq.s32.totalorder %s20, 1
      %p64 = por %p62, %p63
      %p66 = scmp.ne.s32.totalorder %s51, %s65
      %p67 = scmp.eq.s32.totalorder %s20, 0
      %p68 = por %p66, %p67
      %s70 = sadd.s32 %s69, 1
      %p73 = scmp.eq.s32.totalorder %s14, 1
      %p74 = scmp.ne.s32.totalorder %s69, %s71
      %p75 = scmp.eq.s32.totalorder %s14, 0
      %p76 = por %p74, %p75
      %p77 = scmp.ne.s32.totalorder %s69, %s71
      %p78 = scmp.eq.s32.totalorder %s19, 1
      %p79 = por %p77, %p78
      %p80 = scmp.ne.s32.totalorder %s71, %s72
      %p81 = scmp.eq.s32.totalorder %s19, 0
      %p82 = por %p80, %p81
      %p83 = scmp.ne.s32.totalorder %s71, %s72
      %p84 = scmp.eq.s32.totalorder %s20, 1
      %p85 = por %p83, %p84
      %p87 = scmp.ne.s32.totalorder %s72, %s86
      %p88 = scmp.eq.s32.totalorder %s20, 0
      %p89 = por %p87, %p88
      %s91 = sadd.s32 %s90, 1
      %p94 = scmp.eq.s32.totalorder %s14, 1
      %p95 = scmp.ne.s32.totalorder %s90, %s92
      %p96 = scmp.eq.s32.totalorder %s14, 0
      %p97 = por %p95, %p96
      %p98 = scmp.ne.s32.totalorder %s90, %s92
      %p99 = scmp.eq.s32.totalorder %s19, 1
      %p100 = por %p98, %p99
      %p101 = scmp.ne.s32.totalorder %s92, %s93
      %p102 = scmp.eq.s32.totalorder %s19, 0
      %p103 = por %p101, %p102
      %p104 = scmp.ne.s32.totalorder %s92, %s93
      %p105 = scmp.eq.s32.totalorder %s20, 1
      %p106 = por %p104, %p105
      %p108 = scmp.ne.s32.totalorder %s93, %s107
      %p109 = scmp.eq.s32.totalorder %s20, 0
      %p110 = por %p108, %p109
      %s112 = sadd.s32 %s111, 1
      %p115 = scmp.eq.s32.totalorder %s14, 1
      %p116 = scmp.ne.s32.totalorder %s111, %s113
      %p117 = scmp.eq.s32.totalorder %s14, 0
      %p118 = por %p116, %p117
      %p119 = scmp.ne.s32.totalorder %s111, %s113
      %p120 = scmp.eq.s32.totalorder %s19, 1
      %p121 = por %p119, %p120
      %p122 = scmp.ne.s32.totalorder %s113, %s114
      %p123 = scmp.eq.s32.totalorder %s19, 0
      %p124 = por %p122, %p123
      %p125 = scmp.ne.s32.totalorder %s113, %s114
      %p126 = scmp.eq.s32.totalorder %s20, 1
      %p127 = por %p125, %p126
      %p129 = scmp.ne.s32.totalorder %s114, %s128
      %p130 = scmp.eq.s32.totalorder %s20, 0
      %p131 = por %p129, %p130
      %s132 = ssub.s32 %s14, %s21
      %p133 = scmp.eq.s32.totalorder %s132, 0
      %s135 = sadd.s32 %s134, 1
      %s136 = scalar_select %p133, %s134, %s135
      %p139 = pneg %p133
      %p140 = scmp.eq.s32.totalorder %s14, 1
      %p141 = por %p139, %p140
      %p142 = scmp.ne.s32.totalorder %s134, %s137
      %p143 = scmp.eq.s32.totalorder %s14, 0
      %p144 = por %p142, %p143
      %p145 = scmp.ne.s32.totalorder %s134, %s137
      %p146 = scmp.eq.s32.totalorder %s19, 1
      %p147 = por %p145, %p146
      %p148 = scmp.ne.s32.totalorder %s137, %s138
      %p149 = scmp.eq.s32.totalorder %s19, 0
      %p150 = por %p148, %p149
      %p151 = scmp.ne.s32.totalorder %s137, %s138
      %p152 = scmp.eq.s32.totalorder %s20, 1
      %p153 = por %p151, %p152
      %p155 = scmp.ne.s32.totalorder %s138, %s154
      %p156 = scmp.eq.s32.totalorder %s20, 0
      %p157 = por %p155, %p156
      %p158 = scmp.le.s32.totalorder 1, %s14
      %p159 = scmp.lt.s32.totalorder %s14, 3
      %p160 = pnand %p158, %p159
      %p161 = pneg %p160
      // Predicated region
      $region9: #{_mlp_l2norm_impl.1} parent=5 // pred_check
        _
      $region10: #{_mlp_l2norm_impl.1} parent=5 // pred_check_branch
        %163 = sbr.rel (%p160) target = $region12
      $region11: #{_mlp_l2norm_impl.1} parent=5 // pred_region
        %s164 = ssub.s32 %s14, 1
        // Predicated region
        $region13: #{_mlp_l2norm_impl.1} parent=11 // pred_check
          %p165 = pneg %p61
        $region14: #{_mlp_l2norm_impl.1} parent=11 // pred_check_branch
          %167 = sbr.rel (%p165) target = $region16
        $region15: #{_mlp_l2norm_impl.1} parent=11 // pred_region
          _
        $region16: #{_mlp_l2norm_impl.1} parent=11 // pred_fallthru
          _
        // Predicated region
        $region17: #{_mlp_l2norm_impl.1} parent=11 // pred_check
          %p168 = pneg %p82
        $region18: #{_mlp_l2norm_impl.1} parent=11 // pred_check_branch
          %170 = sbr.rel (%p168) target = $region20
        $region19: #{_mlp_l2norm_impl.1} parent=11 // pred_region
          _
        $region20: #{_mlp_l2norm_impl.1} parent=11 // pred_fallthru
          _
        // Predicated region
        $region21: #{_mlp_l2norm_impl.1} parent=11 // pred_check
          %p171 = pneg %p103
        $region22: #{_mlp_l2norm_impl.1} parent=11 // pred_check_branch
          %173 = sbr.rel (%p171) target = $region24
        $region23: #{_mlp_l2norm_impl.1} parent=11 // pred_region
          _
        $region24: #{_mlp_l2norm_impl.1} parent=11 // pred_fallthru
          _
        // Predicated region
        $region25: #{_mlp_l2norm_impl.1} parent=11 // pred_check
          %p174 = pneg %p124
        $region26: #{_mlp_l2norm_impl.1} parent=11 // pred_check_branch
          %176 = sbr.rel (%p174) target = $region28
        $region27: #{_mlp_l2norm_impl.1} parent=11 // pred_region
          _
        $region28: #{_mlp_l2norm_impl.1} parent=11 // pred_fallthru
          _
      $region12: #{_mlp_l2norm_impl.1} parent=5 // pred_fallthru
        _
      %p177 = scmp.lt.s32.totalorder %s14, 2
      // Predicated region
      $region29: #{_mlp_l2norm_impl.1} parent=5 // pred_check
        %p178 = pneg %p177
      $region30: #{_mlp_l2norm_impl.1} parent=5 // pred_check_branch
        %180 = sbr.rel (%p178) target = $region32
      $region31: #{_mlp_l2norm_impl.1} parent=5 // pred_region
        // Predicated region
        $region33: #{_mlp_l2norm_impl.1} parent=31 // pred_check
          %p181 = pneg %p34
        $region34: #{_mlp_l2norm_impl.1} parent=31 // pred_check_branch
          %183 = sbr.rel (%p181) target = $region36
        $region35: #{_mlp_l2norm_impl.1} parent=31 // pred_region
          %p184 = scmp.lt.s32.totalorder %s14, 1
          %s185 = scalar_select %p184, %s14, 1
          %s186 = smul.addr %s185, 8
          %s187 = scalar_lea.vmem %s0, %s186
        $region36: #{_mlp_l2norm_impl.1} parent=31 // pred_fallthru
          _
      $region32: #{_mlp_l2norm_impl.1} parent=5 // pred_fallthru
        _
      %p188 = scmp.le.s32.totalorder 1, %s14
      %p189 = scmp.lt.s32.totalorder %s14, 3
      %p190 = pnand %p188, %p189
      %p191 = pneg %p190
      // Predicated region
      $region37: #{_mlp_l2norm_impl.1} parent=5 // pred_check
        _
      $region38: #{_mlp_l2norm_impl.1} parent=5 // pred_check_branch
        %193 = sbr.rel (%p190) target = $region40
      $region39: #{_mlp_l2norm_impl.1} parent=5 // pred_region
        %s194 = ssub.s32 %s14, 1
        %p195 = scmp.lt.s32.totalorder %s19, 1
        %s196 = scalar_select %p195, %s19, 1
        %s197 = smul.addr %s196, 8
        %s198 = scalar_lea.vmem %s0, %s197
        %p199 = pneg %p40
        %p200 = pneg %p37
        %p201 = pneg %p61
        %p202 = pneg %p58
        %p203 = pneg %p82
        %p204 = pneg %p79
        %p205 = pneg %p103
        %p206 = pneg %p100
        %p207 = pneg %p124
        %p208 = pneg %p121
        %p209 = pneg %p150
        %p210 = pneg %p147
        %s211 = sand.u32 %s137, 1
        %s212 = scalar_lea.sflag [#allocation3], %s211
        %s213 = sand.u32 %s137, 1
        %s214 = smul.addr %s213, 8
        %s215 = scalar_lea.vmem [#allocation2], %s214
        %p216 = scmp.lt.s32.totalorder %s19, 1
        %s217 = scalar_select %p216, %s19, 1
        %s218 = smul.addr %s217, 8
        %s219 = scalar_lea.vmem %s0, %s218
        %v221 = vld [vmem:[%s219] sm:$0xff]
        %v222 = vpack.c.bf16 %v221, %v221
        %v223 = vld [vmem:[%s1] sm:$0xf]
        %v224 = vld [vmem:[%s1 + $0x4] sm:$0xf]
        %v225 = vld [vmem:[%s1 + $0x8] sm:$0xf]
        %v226 = vld [vmem:[%s1 + $0xc] sm:$0xf]
        %v227 = vld [vmem:[%s1 + $0x10] sm:$0xf]
        %v228 = vld [vmem:[%s1 + $0x14] sm:$0xf]
        %v229 = vld [vmem:[%s1 + $0x18] sm:$0xf]
        %v230 = vld [vmem:[%s1 + $0x1c] sm:$0xf]
        %v231 = vld [vmem:[%s1 + $0x20] sm:$0xf]
        %v232 = vld [vmem:[%s1 + $0x24] sm:$0xf]
        %v233 = vld [vmem:[%s1 + $0x28] sm:$0xf]
        %v234 = vld [vmem:[%s1 + $0x2c] sm:$0xf]
        %v235 = vld [vmem:[%s1 + $0x30] sm:$0xf]
        %v236 = vld [vmem:[%s1 + $0x34] sm:$0xf]
        %v237 = vld [vmem:[%s1 + $0x38] sm:$0xf]
        %v238 = vld [vmem:[%s1 + $0x3c] sm:$0xf]
        %v239 = vld [vmem:[%s2] sm:$0x1]
        %v241 = vlaneseq
        %v242 = vshrl.u32 %v241, 7
        %v243 = vsub.s32 0, %v242
        %v244 = vrot.slane %v239, %v243
        %v262 = vunpack.c.l.b16 %v223
        %v263 = vunpack.c.l.b16 %v224
        %v264 = vunpack.c.l.b16 %v225
        %v265 = vunpack.c.l.b16 %v226
        %v266 = vunpack.c.l.b16 %v227
        %v267 = vunpack.c.l.b16 %v228
        %v268 = vunpack.c.l.b16 %v229
        %v269 = vunpack.c.l.b16 %v230
        %v270 = vunpack.c.l.b16 %v231
        %v271 = vunpack.c.l.b16 %v232
        %v272 = vunpack.c.l.b16 %v233
        %v273 = vunpack.c.l.b16 %v234
        %v274 = vunpack.c.l.b16 %v235
        %v275 = vunpack.c.l.b16 %v236
        %v276 = vunpack.c.l.b16 %v237
        %v277 = vunpack.c.l.b16 %v238
        %v278 = vpack.c.b16 %v263, %v262
        %v279 = vpack.c.b16 %v265, %v264
        %v280 = vpack.c.b16 %v267, %v266
        %v281 = vpack.c.b16 %v269, %v268
        %v282 = vpack.c.b16 %v271, %v270
        %v283 = vpack.c.b16 %v273, %v272
        %v284 = vpack.c.b16 %v275, %v274
        %v285 = vpack.c.b16 %v277, %v276
        %294 = vmatprep.subr.bf16.mxu0 0
        %295 = vmatpush1.bf16.msra.mxu0 %v278
        %296 = vmatprep.subr.bf16.mxu0 0
        %297 = vmatpush1.bf16.msra.mxu0 %v279
        %298 = vmatprep.subr.bf16.mxu0 0
        %299 = vmatpush1.bf16.msra.mxu0 %v280
        %300 = vmatprep.subr.bf16.mxu0 0
        %301 = vmatpush1.bf16.msra.mxu0 %v281
        %302 = vmatprep.subr.bf16.mxu0 0
        %303 = vmatpush1.bf16.msra.mxu0 %v282
        %304 = vmatprep.subr.bf16.mxu0 0
        %305 = vmatpush1.bf16.msra.mxu0 %v283
        %306 = vmatprep.subr.bf16.mxu0 0
        %307 = vmatpush1.bf16.msra.mxu0 %v284
        %308 = vmatprep.subr.bf16.mxu0 0
        %309 = vmatpush1.bf16.msra.mxu0 %v285
        %310 = vmatprep.subr.bf16.mxu0 0
        %311 = vmatpush1.bf16.msra.mxu0 0
        %312 = vmatprep.subr.bf16.mxu0 0
        %313 = vmatpush1.bf16.msra.mxu0 0
        %314 = vmatprep.subr.bf16.mxu0 0
        %315 = vmatpush1.bf16.msra.mxu0 0
        %316 = vmatprep.subr.bf16.mxu0 0
        %317 = vmatpush1.bf16.msra.mxu0 0
        %318 = vmatprep.subr.bf16.mxu0 0
        %319 = vmatpush1.bf16.msra.mxu0 0
        %320 = vmatprep.subr.bf16.mxu0 0
        %321 = vmatpush1.bf16.msra.mxu0 0
        %322 = vmatprep.subr.bf16.mxu0 0
        %323 = vmatpush1.bf16.msra.mxu0 0
        %324 = vmatprep.subr.bf16.mxu0 0
        %325 = vmatpush1.bf16.msra.mxu0 0
        %326 = vmatprep.mubr.bf16.mxu0 0
        %327 = vmatmul.mubr.bf16.gmra.mrb[0].mxu0 %v222
        %v328 = vpop.f32.mrb[0].mxu0
        %v329 = vadd.f32 %v244, %v328
        %v330 = vpop.f32.mrb[0].mxu0
        %v331 = vpop.f32.mrb[0].mxu0
        %v332 = vpop.f32.mrb[0].mxu0
        %333 = vdwg.mxu0
        %v334 = vmax.f32 %v329, 0.0
        %v335 = vpack.c.bf16 %v334, %v334
        %v336 = vld [vmem:[%s3] sm:$0xf]
        %v337 = vld [vmem:[%s3 + $0x4] sm:$0xf]
        %v338 = vld [vmem:[%s3 + $0x8] sm:$0xf]
        %v339 = vld [vmem:[%s3 + $0xc] sm:$0xf]
        %v340 = vld [vmem:[%s3 + $0x10] sm:$0xf]
        %v341 = vld [vmem:[%s3 + $0x14] sm:$0xf]
        %v342 = vld [vmem:[%s3 + $0x18] sm:$0xf]
        %v343 = vld [vmem:[%s3 + $0x1c] sm:$0xf]
        %v344 = vld [vmem:[%s3 + $0x20] sm:$0xf]
        %v345 = vld [vmem:[%s3 + $0x24] sm:$0xf]
        %v346 = vld [vmem:[%s3 + $0x28] sm:$0xf]
        %v347 = vld [vmem:[%s3 + $0x2c] sm:$0xf]
        %v348 = vld [vmem:[%s3 + $0x30] sm:$0xf]
        %v349 = vld [vmem:[%s3 + $0x34] sm:$0xf]
        %v350 = vld [vmem:[%s3 + $0x38] sm:$0xf]
        %v351 = vld [vmem:[%s3 + $0x3c] sm:$0xf]
        %v352 = vld [vmem:[%s4] sm:$0x1]
        %v354 = vlaneseq
        %v355 = vshrl.u32 %v354, 7
        %v356 = vsub.s32 0, %v355
        %v357 = vrot.slane %v352, %v356
        %v375 = vunpack.c.l.b16 %v336
        %v376 = vunpack.c.l.b16 %v337
        %v377 = vunpack.c.l.b16 %v338
        %v378 = vunpack.c.l.b16 %v339
        %v379 = vunpack.c.l.b16 %v340
        %v380 = vunpack.c.l.b16 %v341
        %v381 = vunpack.c.l.b16 %v342
        %v382 = vunpack.c.l.b16 %v343
        %v383 = vunpack.c.l.b16 %v344
        %v384 = vunpack.c.l.b16 %v345
        %v385 = vunpack.c.l.b16 %v346
        %v386 = vunpack.c.l.b16 %v347
        %v387 = vunpack.c.l.b16 %v348
        %v388 = vunpack.c.l.b16 %v349
        %v389 = vunpack.c.l.b16 %v350
        %v390 = vunpack.c.l.b16 %v351
        %v391 = vpack.c.b16 %v376, %v375
        %v392 = vpack.c.b16 %v378, %v377
        %v393 = vpack.c.b16 %v380, %v379
        %v394 = vpack.c.b16 %v382, %v381
        %v395 = vpack.c.b16 %v384, %v383
        %v396 = vpack.c.b16 %v386, %v385
        %v397 = vpack.c.b16 %v388, %v387
        %v398 = vpack.c.b16 %v390, %v389
        %407 = vmatprep.subr.bf16.mxu0 0
        %408 = vmatpush1.bf16.msra.mxu0 %v391
        %409 = vmatprep.subr.bf16.mxu0 0
        %410 = vmatpush1.bf16.msra.mxu0 %v392
        %411 = vmatprep.subr.bf16.mxu0 0
        %412 = vmatpush1.bf16.msra.mxu0 %v393
        %413 = vmatprep.subr.bf16.mxu0 0
        %414 = vmatpush1.bf16.msra.mxu0 %v394
        %415 = vmatprep.subr.bf16.mxu0 0
        %416 = vmatpush1.bf16.msra.mxu0 %v395
        %417 = vmatprep.subr.bf16.mxu0 0
        %418 = vmatpush1.bf16.msra.mxu0 %v396
        %419 = vmatprep.subr.bf16.mxu0 0
        %420 = vmatpush1.bf16.msra.mxu0 %v397
        %421 = vmatprep.subr.bf16.mxu0 0
        %422 = vmatpush1.bf16.msra.mxu0 %v398
        %423 = vmatprep.subr.bf16.mxu0 0
        %424 = vmatpush1.bf16.msra.mxu0 0
        %425 = vmatprep.subr.bf16.mxu0 0
        %426 = vmatpush1.bf16.msra.mxu0 0
        %427 = vmatprep.subr.bf16.mxu0 0
        %428 = vmatpush1.bf16.msra.mxu0 0
        %429 = vmatprep.subr.bf16.mxu0 0
        %430 = vmatpush1.bf16.msra.mxu0 0
        %431 = vmatprep.subr.bf16.mxu0 0
        %432 = vmatpush1.bf16.msra.mxu0 0
        %433 = vmatprep.subr.bf16.mxu0 0
        %434 = vmatpush1.bf16.msra.mxu0 0
        %435 = vmatprep.subr.bf16.mxu0 0
        %436 = vmatpush1.bf16.msra.mxu0 0
        %437 = vmatprep.subr.bf16.mxu0 0
        %438 = vmatpush1.bf16.msra.mxu0 0
        %439 = vmatprep.mubr.bf16.mxu0 0
        %440 = vmatmul.mubr.bf16.gmra.mrb[0].mxu0 %v335
        %v441 = vpop.f32.mrb[0].mxu0
        %v442 = vadd.f32 %v357, %v441
        %v443 = vpop.f32.mrb[0].mxu0
        %v444 = vpop.f32.mrb[0].mxu0
        %v445 = vpop.f32.mrb[0].mxu0
        %446 = vdwg.mxu0
        %v447 = vmul.f32 %v442, %v442
        %448 = vadd.xlane.f32.xlu0 %v447
        %v449 = vpop.xlane.xlu0 %448
        %v450 = vrsqrt.pop %v449
        %v451 = vmul.f32 %v449, %v450
        %vm452 = vcmp.eq.f32.partialorder %v449, inf
        %v453 = vsel %vm452, %v449, %v451
        %vm454 = vcmp.eq.f32.partialorder %v449, 0.0
        %v455 = vand.u32 %v449, 2147483648
        %v456 = vsel %vm454, %v455, %v453
        %v457 = vadd.f32 %v456, 1e-07
        %v458 = vrcp.pop %v457
        %v459 = vmul.f32 %v442, %v458
        %460 = vst [vmem:[%s215] sm:$0xff] %v459
        %s461 = sand.u32 %s137, 1
        %s462 = scalar_lea.sflag [#allocation3], %s461
        %s463 = sand.u32 %s137, 1
        %s464 = smul.addr %s463, 8
        %s465 = scalar_lea.vmem [#allocation2], %s464
        // Predicated region
        $region41: #{_mlp_l2norm_impl.1} parent=39 // pred_check
          %p466 = pneg %p147
        $region42: #{_mlp_l2norm_impl.1} parent=39 // pred_check_branch
          %468 = sbr.rel (%p466) target = $region44
        $region43: #{_mlp_l2norm_impl.1} parent=39 // pred_region
          %s470 = ssub.s32 128, 128
          %471 = vsyncadd %s462, %s470
          %s472 = smul.addr %s19, 128
          %s473 = scalar_lea.hbm %s5, %s472
          %s475 = sshll.u32 %s465, 4
          %s476 = int_to_ptr.vmem [resolvable:$true] %s475
          %478 = dma.vmem_to_hbm [thread:$0]  %s476, 128, %s473, %s462
        $region44: #{_mlp_l2norm_impl.1} parent=39 // pred_fallthru
          _
      $region40: #{_mlp_l2norm_impl.1} parent=5 // pred_fallthru
        _
      %p479 = scmp.le.s32.totalorder 2, %s14
      // Predicated region
      $region45: #{_mlp_l2norm_impl.1} parent=5 // pred_check
        %p480 = pneg %p479
      $region46: #{_mlp_l2norm_impl.1} parent=5 // pred_check_branch
        %482 = sbr.rel (%p480) target = $region48
      $region47: #{_mlp_l2norm_impl.1} parent=5 // pred_region
        %s483 = ssub.s32 %s14, 2
        // Predicated region
        $region49: #{_mlp_l2norm_impl.1} parent=47 // pred_check
          %p484 = pneg %p153
        $region50: #{_mlp_l2norm_impl.1} parent=47 // pred_check_branch
          %486 = sbr.rel (%p484) target = $region52
        $region51: #{_mlp_l2norm_impl.1} parent=47 // pred_region
          %s487 = sand.u32 %s138, 1
          %s488 = scalar_lea.sflag [#allocation3], %s487
          %s489 = sand.u32 %s138, 1
          %s490 = smul.addr %s489, 8
          %s491 = scalar_lea.vmem [#allocation2], %s490
          %492 = dma.done %s488, 128
        $region52: #{_mlp_l2norm_impl.1} parent=47 // pred_fallthru
          _
      $region48: #{_mlp_l2norm_impl.1} parent=5 // pred_fallthru
        _
    $region6: #{_mlp_l2norm_impl.1} parent=1 // loop_footer
      %s18 = sadd.s32 1, %s14
    $region7: #{_mlp_l2norm_impl.1} parent=1 // loop_footer_branch
      %13 = sbr.rel target = $region3
    $region8: #{_mlp_l2norm_impl.1} parent=1 // loop_exit
      _
    %493 = vsyncpa [#allocation3], 1
    %s494 = scalar_lea.sflag [#allocation3], 1
    %495 = vsyncpa %s494, 1

</llo_original>
